<compile_context>
chip_gen: v7x
topology: tpu7x:2x2x1
jax: 0.10.0
libtpu: 0.0.40
codegen_flags: <defaults>
</compile_context>

<pallas_src>
import functools

import jax
import jax.numpy as jnp
from jax import lax
from jax.experimental import pallas as pl
from jax.experimental.pallas import tpu as pltpu

X_DIM = 4
Z_DIM = 20
IN_DIM = X_DIM + Z_DIM          # 24
G_DIM = 32
BN_EPS = 1e-5
W_COLS = IN_DIM + G_DIM         # packed weight slab: [:, :24] = W1, [:, 24:56] = W2


def _round_up(n, m):
    return ((n + m - 1) // m) * m


def _ffnn_phase_kernel(xz_ref, w_ref, w3_ref, v_ref, b3_ref, out_ref, *,
                       phase, batch, tile_b, masked):
    """One batch tile, feature-major.

    xz_ref : (IN_DIM, tile_b) bf16   streamed xz^T tile (lane-dense)
    w_ref  : (G_DIM, 56)      bf16   [:, :24] = W1 (out,in), [:, 24:56] = W2
    w3_ref : (1, G_DIM)       bf16   fc3 weight row
    v_ref  : (G_DIM, 8)       f32    cols: b1, b2, scale1, shift1, scale2, shift2
    b3_ref : (1, 1)           f32    fc3 bias scalar (SMEM)
    out_ref: phase<=1 -> (1, G_DIM, 2) per-tile [sum, sumsq]
             phase==2 -> (1, 1, tile_b) fc3 output row (lane-dense)
    """
    # fc1 + ReLU: (32, 24) @ (24, tile_b) -> (32, tile_b), f32 accumulation.
    h = jnp.dot(w_ref[:, 0:IN_DIM], xz_ref[...],
                preferred_element_type=jnp.float32)
    h = jnp.maximum(h + v_ref[:, 0:1], 0.0)

    if phase >= 1:
        h = h * v_ref[:, 2:3] + v_ref[:, 3:4]                        # BN1 (folded)
        h = jnp.dot(w_ref[:, IN_DIM:W_COLS], h.astype(jnp.bfloat16),
                    preferred_element_type=jnp.float32)
        h = jnp.maximum(h + v_ref[:, 1:2], 0.0)                      # fc2 + ReLU

    if phase <= 1:
        if masked:
            # Zero padded batch columns so BN statistics stay batch-exact.
            # (Only emitted when padding exists; one extra select pass per tile.)
            col = (lax.broadcasted_iota(jnp.int32, (1, tile_b), 1)
                   + pl.program_id(0) * tile_b)
            h = jnp.where(col < batch, h, 0.0)
        s = jnp.sum(h, axis=1, keepdims=True)                        # (32, 1)
        ss = jnp.sum(h * h, axis=1, keepdims=True)                   # (32, 1)
        out_ref[0] = jnp.concatenate([s, ss], axis=1)                # (32, 2)
    else:
        h = h * v_ref[:, 4:5] + v_ref[:, 5:6]                        # BN2 (folded)
        y = jnp.dot(w3_ref[...], h.astype(jnp.bfloat16),             # (1, tile_b)
                    preferred_element_type=jnp.float32)
        out_ref[0] = y + b3_ref[0, 0]


def _bn_affine(partials, gamma, beta, batch):
    """Reduce per-tile stats and fold BN into per-feature (scale, shift) columns."""
    tot = jnp.sum(partials, axis=0)                                  # (G_DIM, 2)
    inv_b = 1.0 / float(batch)
    mean = tot[:, 0:1] * inv_b
    # biased (train-mode) variance; clamp against E[x^2]-E[x]^2 cancellation
    var = jnp.maximum(tot[:, 1:2] * inv_b - mean * mean, 0.0)
    scale = gamma.reshape(-1, 1) * lax.rsqrt(var + BN_EPS)
    shift = beta.reshape(-1, 1) - mean * scale
    return scale, shift


def feed_forward_nn(x, z, params, *, tile_b=16384):
    """x: (B, 4) f32, z: (B, 20) f32 -> (B, 1) f32 (PyTorch train-mode forward)."""
    B = x.shape[0]
    tile_b = _round_up(max(128, min(tile_b, _round_up(B, 128))), 128)
    b_pad = _round_up(B, tile_b)
    n_tiles = b_pad // tile_b
    masked = b_pad != B

    # Lane-dense streamed input: xz^T (24, B) bf16; transpose+concat+cast(+pad)
    # fuse into a single wrapper pass.
    xzt = jnp.concatenate([x.T, z.T], axis=0).astype(jnp.bfloat16)
    if masked:
        xzt = jnp.pad(xzt, ((0, 0), (0, b_pad - B)))

    bf = jnp.bfloat16
    w_slab = jnp.concatenate(
        [params["w1"].astype(bf), params["w2"].astype(bf)], axis=1)  # (32, 56)
    w3_row = params["w3"].astype(bf)                                 # (1, 32)
    b3 = params["b3"].reshape(1, 1).astype(jnp.float32)

    def v_slab(aff1=None, aff2=None):
        v = jnp.zeros((G_DIM, 8), jnp.float32)
        v = v.at[:, 0].set(params["b1"].reshape(-1))
        v = v.at[:, 1].set(params["b2"].reshape(-1))
        if aff1 is not None:
            v = v.at[:, 2:3].set(aff1[0]).at[:, 3:4].set(aff1[1])
        if aff2 is not None:
            v = v.at[:, 4:5].set(aff2[0]).at[:, 5:6].set(aff2[1])
        return v

    # ~6 live (32, tile_b) f32 intermediates + double-buffered bf16 input tile
    # (~900 * tile_b bytes); generous headroom, still << v7x 64 MiB physical.
    vmem_limit = int(min(48 * 2**20, max(16 * 2**20, 2048 * tile_b)))

    def run_phase(phase, vvec):
        if phase <= 1:
            out_shape = jax.ShapeDtypeStruct((n_tiles, G_DIM, 2), jnp.float32)
            out_spec = pl.BlockSpec((1, G_DIM, 2), lambda i: (i, 0, 0))
            out_bytes = n_tiles * G_DIM * 2 * 4
        else:
            out_shape = jax.ShapeDtypeStruct((n_tiles, 1, tile_b), jnp.float32)
            out_spec = pl.BlockSpec((1, 1, tile_b), lambda i: (i, 0, 0))
            out_bytes = b_pad * 4
        flops = 2 * b_pad * IN_DIM * G_DIM
        if phase >= 1:
            flops += 2 * b_pad * G_DIM * G_DIM
        if phase == 2:
            flops += 2 * b_pad * G_DIM
        cost = pl.CostEstimate(
            flops=int(flops), transcendentals=0,
            bytes_accessed=int(b_pad * IN_DIM * 2 + out_bytes + 8 * 1024))
        return pl.pallas_call(
            functools.partial(_ffnn_phase_kernel, phase=phase, batch=B,
                              tile_b=tile_b, masked=masked),
            grid=(n_tiles,),
            in_specs=[
                pl.BlockSpec((IN_DIM, tile_b), lambda i: (0, i)),    # streamed xz^T
                pl.BlockSpec((G_DIM, W_COLS), lambda i: (0, 0)),     # resident W1|W2
                pl.BlockSpec((1, G_DIM), lambda i: (0, 0)),          # resident w3 row
                pl.BlockSpec((G_DIM, 8), lambda i: (0, 0)),          # biases + BN affine
                pl.BlockSpec(memory_space=pltpu.MemorySpace.SMEM),   # fc3 bias scalar
            ],
            out_specs=out_spec,
            out_shape=out_shape,
            compiler_params=pltpu.CompilerParams(
                dimension_semantics=("parallel",),
                vmem_limit_bytes=vmem_limit),
            cost_estimate=cost,
        )(xzt, w_slab, w3_row, vvec, b3)

    stats1 = run_phase(0, v_slab())
    aff1 = _bn_affine(stats1, params["g1"], params["be1"], B)
    stats2 = run_phase(1, v_slab(aff1))
    aff2 = _bn_affine(stats2, params["g2"], params["be2"], B)
    out = run_phase(2, v_slab(aff1, aff2))
    return out.reshape(b_pad, 1)[:B]


def init_params(key):
    """Deterministic synthetic parameters, PyTorch layouts: weight = (out, in)."""
    ks = jax.random.split(key, 6)

    def lin(kw, kb, fan_in, fan_out):
        bound = fan_in ** -0.5
        w = jax.random.uniform(kw, (fan_out, fan_in), jnp.float32, -bound, bound)
        b = jax.random.uniform(kb, (fan_out,), jnp.float32, -bound, bound)
        return w, b

    w1, b1 = lin(ks[0], ks[1], IN_DIM, G_DIM)
    w2, b2 = lin(ks[2], ks[3], G_DIM, G_DIM)
    w3, b3 = lin(ks[4], ks[5], G_DIM, 1)
    return {
        "w1": w1, "b1": b1,
        "g1": jnp.ones((G_DIM,), jnp.float32), "be1": jnp.zeros((G_DIM,), jnp.float32),
        "w2": w2, "b2": b2,
        "g2": jnp.ones((G_DIM,), jnp.float32), "be2": jnp.zeros((G_DIM,), jnp.float32),
        "w3": w3, "b3": b3,
    }


def _reference(x, z, p):
    """Pure-JAX reference using the same bf16-operand / f32-statistics formulation."""
    bf = jnp.bfloat16

    def bn(h, g, be):
        mean = jnp.mean(h, axis=0, keepdims=True)
        var = jnp.maximum(jnp.mean(h * h, axis=0, keepdims=True) - mean * mean, 0.0)
        scale = g.reshape(1, -1) * lax.rsqrt(var + BN_EPS)
        return h * scale + (be.reshape(1, -1) - mean * scale)

    h = jnp.concatenate([x, z], axis=1).astype(bf)
    h = jnp.maximum(jnp.dot(h, p["w1"].T.astype(bf),
                            preferred_element_type=jnp.float32) + p["b1"], 0.0)
    h = bn(h, p["g1"], p["be1"])
    h = jnp.maximum(jnp.dot(h.astype(bf), p["w2"].T.astype(bf),
                            preferred_element_type=jnp.float32) + p["b2"], 0.0)
    h = bn(h, p["g2"], p["be2"])
    return jnp.dot(h.astype(bf), p["w3"].T.astype(bf),
                   preferred_element_type=jnp.float32) + p["b3"]


if __name__ == "__main__":
    key = jax.random.PRNGKey(0)
    kx, kz, kp = jax.random.split(key, 3)
    params = init_params(kp)

    fwd = jax.jit(feed_forward_nn, static_argnames=("tile_b",))

    # Small-shape smoke test (single tile; padded + masked batch).
    B = 8
    x = jax.random.normal(kx, (B, X_DIM), jnp.float32)
    z = jax.random.normal(kz, (B, Z_DIM), jnp.float32)
    out = jax.block_until_ready(fwd(x, z, params, tile_b=16384))
    ref = _reference(x, z, params)
    assert out.shape == (B, 1), out.shape
    err = float(jnp.max(jnp.abs(out - ref)))
    assert jnp.allclose(out, ref, atol=5e-3, rtol=5e-3), f"max abs err {err}"

    # Multi-tile path: exercises per-tile partial stats, padding and masking.
    B2 = 200
    x2 = jax.random.normal(jax.random.PRNGKey(1), (B2, X_DIM), jnp.float32)
    z2 = jax.random.normal(jax.random.PRNGKey(2), (B2, Z_DIM), jnp.float32)
    out2 = jax.block_until_ready(fwd(x2, z2, params, tile_b=128))
    ref2 = _reference(x2, z2, params)
    assert out2.shape == (B2, 1), out2.shape
    err2 = float(jnp.max(jnp.abs(out2 - ref2)))
    assert jnp.allclose(out2, ref2, atol=5e-3, rtol=5e-3), f"max abs err {err2}"

    print("KERNEL_OK")
</pallas_src>

<mosaic_0001>
module attributes {stable_mosaic.version = 11 : i64} {
  func.func @_ffnn_phase_kernel(%arg0: i32, %arg1: memref<24x128xbf16, #tpu.memory_space<vmem>>, %arg2: memref<32x56xbf16, #tpu.memory_space<vmem>>, %arg3: memref<1x32xbf16, #tpu.memory_space<vmem>>, %arg4: memref<32x8xf32, #tpu.memory_space<vmem>>, %arg5: memref<1x1xf32, #tpu.memory_space<smem>>, %arg6: memref<1x32x2xf32, #tpu.memory_space<vmem>>) attributes {dimension_semantics = [#tpu.dimension_semantics<parallel>], iteration_bounds = array<i64: 1>, scalar_prefetch = 0 : i64, scratch_operands = 0 : i64, tpu.core_type = #tpu.core_type<tc>, window_params = [{transform_indices = @transform_0, window_bounds = array<i64: 24, 128>}, {pipeline_mode = #tpu.pipeline_mode<synchronous>, transform_indices = @transform_1, window_bounds = array<i64: 32, 56>}, {pipeline_mode = #tpu.pipeline_mode<synchronous>, transform_indices = @transform_2, window_bounds = array<i64: 1, 32>}, {pipeline_mode = #tpu.pipeline_mode<synchronous>, transform_indices = @transform_3, window_bounds = array<i64: 32, 8>}, {transform_indices = @transform_4, window_bounds = array<i64: 1, 1>}, {transform_indices = @transform_5, window_bounds = array<i64: 1, 32, 2>}]} {
    %c0 = arith.constant 0 : index
    %c0_0 = arith.constant 0 : index
    %0 = vector.load %arg2[%c0, %c0_0] : memref<32x56xbf16, #tpu.memory_space<vmem>>, vector<32x24xbf16>
    %c0_1 = arith.constant 0 : index
    %c0_2 = arith.constant 0 : index
    %1 = vector.load %arg1[%c0_1, %c0_2] : memref<24x128xbf16, #tpu.memory_space<vmem>>, vector<24x128xbf16>
    %cst = arith.constant dense<0.000000e+00> : vector<32x128xf32>
    %2 = tpu.matmul %0, %1, %cst {dimension_numbers = #tpu.dot_dimension_numbers<[1], [0], [0], [1], [0, 0, 1, 1], [], []>} : vector<32x24xbf16>, vector<24x128xbf16>, vector<32x128xf32> -> vector<32x128xf32>
    %c0_3 = arith.constant 0 : index
    %c0_4 = arith.constant 0 : index
    %3 = vector.load %arg4[%c0_3, %c0_4] : memref<32x8xf32, #tpu.memory_space<vmem>>, vector<32x1xf32>
    %4 = vector.broadcast %3 : vector<32x1xf32> to vector<32x128xf32>
    %5 = arith.addf %2, %4 : vector<32x128xf32>
    %cst_5 = arith.constant 0.000000e+00 : f32
    %6 = vector.broadcast %cst_5 : f32 to vector<32x128xf32>
    %7 = arith.maximumf %5, %6 : vector<32x128xf32>
    %8 = tpu.iota {dimensions = array<i32: 1>} : vector<1x128xi32>
    %c128_i32 = arith.constant 128 : i32
    %9 = arith.muli %arg0, %c128_i32 : i32
    %10 = vector.broadcast %9 : i32 to vector<1x128xi32>
    %11 = arith.addi %8, %10 : vector<1x128xi32>
    %c8_i32 = arith.constant 8 : i32
    %12 = vector.broadcast %c8_i32 : i32 to vector<1x128xi32>
    %13 = arith.cmpi slt, %11, %12 : vector<1x128xi32>
    %cst_6 = arith.constant 0.000000e+00 : f32
    %14 = vector.shape_cast %13 : vector<1x128xi1> to vector<1x128xi1>
    %15 = vector.broadcast %14 : vector<1x128xi1> to vector<32x128xi1>
    %16 = vector.broadcast %cst_6 : f32 to vector<32x128xf32>
    %17 = arith.select %15, %7, %16 : vector<32x128xi1>, vector<32x128xf32>
    %cst_7 = arith.constant dense<0.000000e+00> : vector<32xf32>
    %18 = vector.multi_reduction <add>, %17, %cst_7 [1] : vector<32x128xf32> to vector<32xf32>
    %19 = vector.shape_cast %18 : vector<32xf32> to vector<32x1xf32>
    %20 = arith.mulf %17, %17 : vector<32x128xf32>
    %cst_8 = arith.constant dense<0.000000e+00> : vector<32xf32>
    %21 = vector.multi_reduction <add>, %20, %cst_8 [1] : vector<32x128xf32> to vector<32xf32>
    %22 = vector.shape_cast %21 : vector<32xf32> to vector<32x1xf32>
    %23 = tpu.concatenate %19, %22 in 1 : vector<32x1xf32>, vector<32x1xf32> -> vector<32x2xf32>
    %c0_9 = arith.constant 0 : index
    %c0_10 = arith.constant 0 : index
    %c0_11 = arith.constant 0 : index
    %24 = vector.load %arg6[%c0_9, %c0_10, %c0_11] : memref<1x32x2xf32, #tpu.memory_space<vmem>>, vector<1x32x2xf32>
    %25 = vector.shape_cast %24 : vector<1x32x2xf32> to vector<32x2xf32>
    %26 = vector.shape_cast %23 : vector<32x2xf32> to vector<1x32x2xf32>
    tpu.vector_store %arg6[%c0_9, %c0_10, %c0_11], %26 {strides = array<i32>} : memref<1x32x2xf32, #tpu.memory_space<vmem>>, vector<1x32x2xf32>,
    return
  }
  func.func @transform_0(%arg0: i32) -> (i32, i32) {
    %c0_i32 = arith.constant 0 : i32
    %c0_i32_0 = arith.constant 0 : i32
    return %c0_i32, %arg0 : i32, i32
  }
  func.func @transform_1(%arg0: i32) -> (i32, i32) {
    %c0_i32 = arith.constant 0 : i32
    %c0_i32_0 = arith.constant 0 : i32
    %c0_i32_1 = arith.constant 0 : i32
    return %c0_i32, %c0_i32_0 : i32, i32
  }
  func.func @transform_2(%arg0: i32) -> (i32, i32) {
    %c0_i32 = arith.constant 0 : i32
    %c0_i32_0 = arith.constant 0 : i32
    %c0_i32_1 = arith.constant 0 : i32
    return %c0_i32, %c0_i32_0 : i32, i32
  }
  func.func @transform_3(%arg0: i32) -> (i32, i32) {
    %c0_i32 = arith.constant 0 : i32
    %c0_i32_0 = arith.constant 0 : i32
    %c0_i32_1 = arith.constant 0 : i32
    return %c0_i32, %c0_i32_0 : i32, i32
  }
  func.func @transform_4(%arg0: i32) -> (i32, i32) {
    %c0_i32 = arith.constant 0 : i32
    %c0_i32_0 = arith.constant 0 : i32
    %c0_i32_1 = arith.constant 0 : i32
    return %c0_i32, %c0_i32_0 : i32, i32
  }
  func.func @transform_5(%arg0: i32) -> (i32, i32, i32) {
    %c0_i32 = arith.constant 0 : i32
    %c0_i32_0 = arith.constant 0 : i32
    %c0_i32_1 = arith.constant 0 : i32
    return %arg0, %c0_i32, %c0_i32_0 : i32, i32, i32
  }
}

module attributes {stable_mosaic.version = 11 : i64} {
  func.func @_ffnn_phase_kernel(%arg0: i32, %arg1: memref<24x128xbf16, #tpu.memory_space<vmem>>, %arg2: memref<32x56xbf16, #tpu.memory_space<vmem>>, %arg3: memref<1x32xbf16, #tpu.memory_space<vmem>>, %arg4: memref<32x8xf32, #tpu.memory_space<vmem>>, %arg5: memref<1x1xf32, #tpu.memory_space<smem>>, %arg6: memref<1x32x2xf32, #tpu.memory_space<vmem>>) attributes {dimension_semantics = [#tpu.dimension_semantics<parallel>], iteration_bounds = array<i64: 1>, scalar_prefetch = 0 : i64, scratch_operands = 0 : i64, tpu.core_type = #tpu.core_type<tc>, window_params = [{transform_indices = @transform_0, window_bounds = array<i64: 24, 128>}, {pipeline_mode = #tpu.pipeline_mode<synchronous>, transform_indices = @transform_1, window_bounds = array<i64: 32, 56>}, {pipeline_mode = #tpu.pipeline_mode<synchronous>, transform_indices = @transform_2, window_bounds = array<i64: 1, 32>}, {pipeline_mode = #tpu.pipeline_mode<synchronous>, transform_indices = @transform_3, window_bounds = array<i64: 32, 8>}, {transform_indices = @transform_4, window_bounds = array<i64: 1, 1>}, {transform_indices = @transform_5, window_bounds = array<i64: 1, 32, 2>}]} {
    %c0 = arith.constant 0 : index
    %c0_0 = arith.constant 0 : index
    %0 = vector.load %arg2[%c0, %c0_0] : memref<32x56xbf16, #tpu.memory_space<vmem>>, vector<32x24xbf16>
    %c0_1 = arith.constant 0 : index
    %c0_2 = arith.constant 0 : index
    %1 = vector.load %arg1[%c0_1, %c0_2] : memref<24x128xbf16, #tpu.memory_space<vmem>>, vector<24x128xbf16>
    %cst = arith.constant dense<0.000000e+00> : vector<32x128xf32>
    %2 = tpu.matmul %0, %1, %cst {dimension_numbers = #tpu.dot_dimension_numbers<[1], [0], [0], [1], [0, 0, 1, 1], [], []>} : vector<32x24xbf16>, vector<24x128xbf16>, vector<32x128xf32> -> vector<32x128xf32>
    %c0_3 = arith.constant 0 : index
    %c0_4 = arith.constant 0 : index
    %3 = vector.load %arg4[%c0_3, %c0_4] : memref<32x8xf32, #tpu.memory_space<vmem>>, vector<32x1xf32>
    %4 = vector.broadcast %3 : vector<32x1xf32> to vector<32x128xf32>
    %5 = arith.addf %2, %4 : vector<32x128xf32>
    %cst_5 = arith.constant 0.000000e+00 : f32
    %6 = vector.broadcast %cst_5 : f32 to vector<32x128xf32>
    %7 = arith.maximumf %5, %6 : vector<32x128xf32>
    %c0_6 = arith.constant 0 : index
    %c2 = arith.constant 2 : index
    %8 = vector.load %arg4[%c0_6, %c2] : memref<32x8xf32, #tpu.memory_space<vmem>>, vector<32x1xf32>
    %9 = vector.broadcast %8 : vector<32x1xf32> to vector<32x128xf32>
    %10 = arith.mulf %7, %9 : vector<32x128xf32>
    %c0_7 = arith.constant 0 : index
    %c3 = arith.constant 3 : index
    %11 = vector.load %arg4[%c0_7, %c3] : memref<32x8xf32, #tpu.memory_space<vmem>>, vector<32x1xf32>
    %12 = vector.broadcast %11 : vector<32x1xf32> to vector<32x128xf32>
    %13 = arith.addf %10, %12 : vector<32x128xf32>
    %c0_8 = arith.constant 0 : index
    %c24 = arith.constant 24 : index
    %14 = vector.load %arg2[%c0_8, %c24] : memref<32x56xbf16, #tpu.memory_space<vmem>>, vector<32x32xbf16>
    %15 = arith.truncf %13 : vector<32x128xf32> to vector<32x128xbf16>
    %cst_9 = arith.constant dense<0.000000e+00> : vector<32x128xf32>
    %16 = tpu.matmul %14, %15, %cst_9 {dimension_numbers = #tpu.dot_dimension_numbers<[1], [0], [0], [1], [0, 0, 1, 1], [], []>} : vector<32x32xbf16>, vector<32x128xbf16>, vector<32x128xf32> -> vector<32x128xf32>
    %c0_10 = arith.constant 0 : index
    %c1 = arith.constant 1 : index
    %17 = vector.load %arg4[%c0_10, %c1] : memref<32x8xf32, #tpu.memory_space<vmem>>, vector<32x1xf32>
    %18 = vector.broadcast %17 : vector<32x1xf32> to vector<32x128xf32>
    %19 = arith.addf %16, %18 : vector<32x128xf32>
    %cst_11 = arith.constant 0.000000e+00 : f32
    %20 = vector.broadcast %cst_11 : f32 to vector<32x128xf32>
    %21 = arith.maximumf %19, %20 : vector<32x128xf32>
    %22 = tpu.iota {dimensions = array<i32: 1>} : vector<1x128xi32>
    %c128_i32 = arith.constant 128 : i32
    %23 = arith.muli %arg0, %c128_i32 : i32
    %24 = vector.broadcast %23 : i32 to vector<1x128xi32>
    %25 = arith.addi %22, %24 : vector<1x128xi32>
    %c8_i32 = arith.constant 8 : i32
    %26 = vector.broadcast %c8_i32 : i32 to vector<1x128xi32>
    %27 = arith.cmpi slt, %25, %26 : vector<1x128xi32>
    %cst_12 = arith.constant 0.000000e+00 : f32
    %28 = vector.shape_cast %27 : vector<1x128xi1> to vector<1x128xi1>
    %29 = vector.broadcast %28 : vector<1x128xi1> to vector<32x128xi1>
    %30 = vector.broadcast %cst_12 : f32 to vector<32x128xf32>
    %31 = arith.select %29, %21, %30 : vector<32x128xi1>, vector<32x128xf32>
    %cst_13 = arith.constant dense<0.000000e+00> : vector<32xf32>
    %32 = vector.multi_reduction <add>, %31, %cst_13 [1] : vector<32x128xf32> to vector<32xf32>
    %33 = vector.shape_cast %32 : vector<32xf32> to vector<32x1xf32>
    %34 = arith.mulf %31, %31 : vector<32x128xf32>
    %cst_14 = arith.constant dense<0.000000e+00> : vector<32xf32>
    %35 = vector.multi_reduction <add>, %34, %cst_14 [1] : vector<32x128xf32> to vector<32xf32>
    %36 = vector.shape_cast %35 : vector<32xf32> to vector<32x1xf32>
    %37 = tpu.concatenate %33, %36 in 1 : vector<32x1xf32>, vector<32x1xf32> -> vector<32x2xf32>
    %c0_15 = arith.constant 0 : index
    %c0_16 = arith.constant 0 : index
    %c0_17 = arith.constant 0 : index
    %38 = vector.load %arg6[%c0_15, %c0_16, %c0_17] : memref<1x32x2xf32, #tpu.memory_space<vmem>>, vector<1x32x2xf32>
    %39 = vector.shape_cast %38 : vector<1x32x2xf32> to vector<32x2xf32>
    %40 = vector.shape_cast %37 : vector<32x2xf32> to vector<1x32x2xf32>
    tpu.vector_store %arg6[%c0_15, %c0_16, %c0_17], %40 {strides = array<i32>} : memref<1x32x2xf32, #tpu.memory_space<vmem>>, vector<1x32x2xf32>,
    return
  }
  func.func @transform_0(%arg0: i32) -> (i32, i32) {
    %c0_i32 = arith.constant 0 : i32
    %c0_i32_0 = arith.constant 0 : i32
    return %c0_i32, %arg0 : i32, i32
  }
  func.func @transform_1(%arg0: i32) -> (i32, i32) {
    %c0_i32 = arith.constant 0 : i32
    %c0_i32_0 = arith.constant 0 : i32
    %c0_i32_1 = arith.constant 0 : i32
    return %c0_i32, %c0_i32_0 : i32, i32
  }
  func.func @transform_2(%arg0: i32) -> (i32, i32) {
    %c0_i32 = arith.constant 0 : i32
    %c0_i32_0 = arith.constant 0 : i32
    %c0_i32_1 = arith.constant 0 : i32
    return %c0_i32, %c0_i32_0 : i32, i32
  }
  func.func @transform_3(%arg0: i32) -> (i32, i32) {
    %c0_i32 = arith.constant 0 : i32
    %c0_i32_0 = arith.constant 0 : i32
    %c0_i32_1 = arith.constant 0 : i32
    return %c0_i32, %c0_i32_0 : i32, i32
  }
  func.func @transform_4(%arg0: i32) -> (i32, i32) {
    %c0_i32 = arith.constant 0 : i32
    %c0_i32_0 = arith.constant 0 : i32
    %c0_i32_1 = arith.constant 0 : i32
    return %c0_i32, %c0_i32_0 : i32, i32
  }
  func.func @transform_5(%arg0: i32) -> (i32, i32, i32) {
    %c0_i32 = arith.constant 0 : i32
    %c0_i32_0 = arith.constant 0 : i32
    %c0_i32_1 = arith.constant 0 : i32
    return %arg0, %c0_i32, %c0_i32_0 : i32, i32, i32
  }
}

module attributes {stable_mosaic.version = 11 : i64} {
  func.func @_ffnn_phase_kernel(%arg0: i32, %arg1: memref<24x128xbf16, #tpu.memory_space<vmem>>, %arg2: memref<32x56xbf16, #tpu.memory_space<vmem>>, %arg3: memref<1x32xbf16, #tpu.memory_space<vmem>>, %arg4: memref<32x8xf32, #tpu.memory_space<vmem>>, %arg5: memref<1x1xf32, #tpu.memory_space<smem>>, %arg6: memref<1x1x128xf32, #tpu.memory_space<vmem>>) attributes {dimension_semantics = [#tpu.dimension_semantics<parallel>], iteration_bounds = array<i64: 1>, scalar_prefetch = 0 : i64, scratch_operands = 0 : i64, tpu.core_type = #tpu.core_type<tc>, window_params = [{transform_indices = @transform_0, window_bounds = array<i64: 24, 128>}, {pipeline_mode = #tpu.pipeline_mode<synchronous>, transform_indices = @transform_1, window_bounds = array<i64: 32, 56>}, {pipeline_mode = #tpu.pipeline_mode<synchronous>, transform_indices = @transform_2, window_bounds = array<i64: 1, 32>}, {pipeline_mode = #tpu.pipeline_mode<synchronous>, transform_indices = @transform_3, window_bounds = array<i64: 32, 8>}, {transform_indices = @transform_4, window_bounds = array<i64: 1, 1>}, {transform_indices = @transform_5, window_bounds = array<i64: 1, 1, 128>}]} {
    %c0 = arith.constant 0 : index
    %c0_0 = arith.constant 0 : index
    %0 = vector.load %arg2[%c0, %c0_0] : memref<32x56xbf16, #tpu.memory_space<vmem>>, vector<32x24xbf16>
    %c0_1 = arith.constant 0 : index
    %c0_2 = arith.constant 0 : index
    %1 = vector.load %arg1[%c0_1, %c0_2] : memref<24x128xbf16, #tpu.memory_space<vmem>>, vector<24x128xbf16>
    %cst = arith.constant dense<0.000000e+00> : vector<32x128xf32>
    %2 = tpu.matmul %0, %1, %cst {dimension_numbers = #tpu.dot_dimension_numbers<[1], [0], [0], [1], [0, 0, 1, 1], [], []>} : vector<32x24xbf16>, vector<24x128xbf16>, vector<32x128xf32> -> vector<32x128xf32>
    %c0_3 = arith.constant 0 : index
    %c0_4 = arith.constant 0 : index
    %3 = vector.load %arg4[%c0_3, %c0_4] : memref<32x8xf32, #tpu.memory_space<vmem>>, vector<32x1xf32>
    %4 = vector.broadcast %3 : vector<32x1xf32> to vector<32x128xf32>
    %5 = arith.addf %2, %4 : vector<32x128xf32>
    %cst_5 = arith.constant 0.000000e+00 : f32
    %6 = vector.broadcast %cst_5 : f32 to vector<32x128xf32>
    %7 = arith.maximumf %5, %6 : vector<32x128xf32>
    %c0_6 = arith.constant 0 : index
    %c2 = arith.constant 2 : index
    %8 = vector.load %arg4[%c0_6, %c2] : memref<32x8xf32, #tpu.memory_space<vmem>>, vector<32x1xf32>
    %9 = vector.broadcast %8 : vector<32x1xf32> to vector<32x128xf32>
    %10 = arith.mulf %7, %9 : vector<32x128xf32>
    %c0_7 = arith.constant 0 : index
    %c3 = arith.constant 3 : index
    %11 = vector.load %arg4[%c0_7, %c3] : memref<32x8xf32, #tpu.memory_space<vmem>>, vector<32x1xf32>
    %12 = vector.broadcast %11 : vector<32x1xf32> to vector<32x128xf32>
    %13 = arith.addf %10, %12 : vector<32x128xf32>
    %c0_8 = arith.constant 0 : index
    %c24 = arith.constant 24 : index
    %14 = vector.load %arg2[%c0_8, %c24] : memref<32x56xbf16, #tpu.memory_space<vmem>>, vector<32x32xbf16>
    %15 = arith.truncf %13 : vector<32x128xf32> to vector<32x128xbf16>
    %cst_9 = arith.constant dense<0.000000e+00> : vector<32x128xf32>
    %16 = tpu.matmul %14, %15, %cst_9 {dimension_numbers = #tpu.dot_dimension_numbers<[1], [0], [0], [1], [0, 0, 1, 1], [], []>} : vector<32x32xbf16>, vector<32x128xbf16>, vector<32x128xf32> -> vector<32x128xf32>
    %c0_10 = arith.constant 0 : index
    %c1 = arith.constant 1 : index
    %17 = vector.load %arg4[%c0_10, %c1] : memref<32x8xf32, #tpu.memory_space<vmem>>, vector<32x1xf32>
    %18 = vector.broadcast %17 : vector<32x1xf32> to vector<32x128xf32>
    %19 = arith.addf %16, %18 : vector<32x128xf32>
    %cst_11 = arith.constant 0.000000e+00 : f32
    %20 = vector.broadcast %cst_11 : f32 to vector<32x128xf32>
    %21 = arith.maximumf %19, %20 : vector<32x128xf32>
    %c0_12 = arith.constant 0 : index
    %c4 = arith.constant 4 : index
    %22 = vector.load %arg4[%c0_12, %c4] : memref<32x8xf32, #tpu.memory_space<vmem>>, vector<32x1xf32>
    %23 = vector.broadcast %22 : vector<32x1xf32> to vector<32x128xf32>
    %24 = arith.mulf %21, %23 : vector<32x128xf32>
    %c0_13 = arith.constant 0 : index
    %c5 = arith.constant 5 : index
    %25 = vector.load %arg4[%c0_13, %c5] : memref<32x8xf32, #tpu.memory_space<vmem>>, vector<32x1xf32>
    %26 = vector.broadcast %25 : vector<32x1xf32> to vector<32x128xf32>
    %27 = arith.addf %24, %26 : vector<32x128xf32>
    %c0_14 = arith.constant 0 : index
    %c0_15 = arith.constant 0 : index
    %28 = vector.load %arg3[%c0_14, %c0_15] : memref<1x32xbf16, #tpu.memory_space<vmem>>, vector<1x32xbf16>
    %29 = arith.truncf %27 : vector<32x128xf32> to vector<32x128xbf16>
    %cst_16 = arith.constant dense<0.000000e+00> : vector<1x128xf32>
    %30 = tpu.matmul %28, %29, %cst_16 {dimension_numbers = #tpu.dot_dimension_numbers<[1], [0], [0], [1], [0, 0, 1, 1], [], []>} : vector<1x32xbf16>, vector<32x128xbf16>, vector<1x128xf32> -> vector<1x128xf32>
    %c0_17 = arith.constant 0 : index
    %c0_18 = arith.constant 0 : index
    %31 = memref.load %arg5[%c0_17, %c0_18] : memref<1x1xf32, #tpu.memory_space<smem>>
    %32 = vector.broadcast %31 : f32 to vector<1x128xf32>
    %33 = arith.addf %30, %32 : vector<1x128xf32>
    %c0_19 = arith.constant 0 : index
    %c0_20 = arith.constant 0 : index
    %c0_21 = arith.constant 0 : index
    %34 = vector.load %arg6[%c0_19, %c0_20, %c0_21] : memref<1x1x128xf32, #tpu.memory_space<vmem>>, vector<1x1x128xf32>
    %35 = vector.shape_cast %34 : vector<1x1x128xf32> to vector<1x128xf32>
    %36 = vector.shape_cast %33 : vector<1x128xf32> to vector<1x1x128xf32>
    tpu.vector_store %arg6[%c0_19, %c0_20, %c0_21], %36 {strides = array<i32>} : memref<1x1x128xf32, #tpu.memory_space<vmem>>, vector<1x1x128xf32>,
    return
  }
  func.func @transform_0(%arg0: i32) -> (i32, i32) {
    %c0_i32 = arith.constant 0 : i32
    %c0_i32_0 = arith.constant 0 : i32
    return %c0_i32, %arg0 : i32, i32
  }
  func.func @transform_1(%arg0: i32) -> (i32, i32) {
    %c0_i32 = arith.constant 0 : i32
    %c0_i32_0 = arith.constant 0 : i32
    %c0_i32_1 = arith.constant 0 : i32
    return %c0_i32, %c0_i32_0 : i32, i32
  }
  func.func @transform_2(%arg0: i32) -> (i32, i32) {
    %c0_i32 = arith.constant 0 : i32
    %c0_i32_0 = arith.constant 0 : i32
    %c0_i32_1 = arith.constant 0 : i32
    return %c0_i32, %c0_i32_0 : i32, i32
  }
  func.func @transform_3(%arg0: i32) -> (i32, i32) {
    %c0_i32 = arith.constant 0 : i32
    %c0_i32_0 = arith.constant 0 : i32
    %c0_i32_1 = arith.constant 0 : i32
    return %c0_i32, %c0_i32_0 : i32, i32
  }
  func.func @transform_4(%arg0: i32) -> (i32, i32) {
    %c0_i32 = arith.constant 0 : i32
    %c0_i32_0 = arith.constant 0 : i32
    %c0_i32_1 = arith.constant 0 : i32
    return %c0_i32, %c0_i32_0 : i32, i32
  }
  func.func @transform_5(%arg0: i32) -> (i32, i32, i32) {
    %c0_i32 = arith.constant 0 : i32
    %c0_i32_0 = arith.constant 0 : i32
    %c0_i32_1 = arith.constant 0 : i32
    return %arg0, %c0_i32, %c0_i32_0 : i32, i32, i32
  }
}

</mosaic_0001>

<llo_original>
// kernel: feed_forward_nn.3
$region0: #{feed_forward_nn.3}
  #allocation0 [shape = 'u32[]', space=smem, size = 0x4, offset = 0x4, fixed_abs, tag = 'smem constant byte address 0x4 - core index']
  #allocation1 [shape = 'u32[144,128]{1,0:T(1,128)}', space=vmem, size = 0x12000, scoped, tag = 'internal scratch']
  #allocation2 [shape = 'f32[1,1]{1,0:T(1,128)S(6)}', space=smem, size = 0x200, scoped, tag = 'scoped memory for feed_forward_nn.3']
  %s0 = inlined_call_operand.vmem [shape: bf16[24,128], index: 0, kind: input, shape index: {}]
  %s1 = inlined_call_operand.vmem [shape: bf16[32,56], index: 1, kind: input, shape index: {}]
  %s2 = inlined_call_operand.vmem [shape: bf16[1,32], index: 2, kind: input, shape index: {}]
  %s3 = inlined_call_operand.vmem [shape: f32[32,8], index: 3, kind: input, shape index: {}]
  %s4 = inlined_call_operand.<no memory space> [shape: f32[1,1], index: 4, kind: input, shape index: {}]
  %s5 = inlined_call_operand.vmem [shape: f32[1,32,2], index: 5, kind: output, shape index: {}]
  %s6 = sld [smem:[#allocation0]]
  $region30: #{feed_forward_nn.3} parent=0
    _
  %s8 = ssub.s32 1, %s6
  %s9 = scalar_select 0, %s8, %s6
  %10 = sst [smem:[#allocation2]] %s4
  // Predicated region
  $region2: #{feed_forward_nn.3} parent=0 // pred_check
    _
  $region3: #{feed_forward_nn.3} parent=0 // pred_check_branch
    %12 = sbr.rel (0) target = $region5
  $region4: #{feed_forward_nn.3} parent=0 // pred_region
    _
  $region5: #{feed_forward_nn.3} parent=0 // pred_fallthru
    _
  // Predicated region
  $region6: #{feed_forward_nn.3} parent=0 // pred_check
    _
  $region7: #{feed_forward_nn.3} parent=0 // pred_check_branch
    %14 = sbr.rel (0) target = $region9
  $region8: #{feed_forward_nn.3} parent=0 // pred_region
    _
  $region9: #{feed_forward_nn.3} parent=0 // pred_fallthru
    _
  // Predicated region
  $region10: #{feed_forward_nn.3} parent=0 // pred_check
    _
  $region11: #{feed_forward_nn.3} parent=0 // pred_check_branch
    %16 = sbr.rel (0) target = $region13
  $region12: #{feed_forward_nn.3} parent=0 // pred_region
    _
  $region13: #{feed_forward_nn.3} parent=0 // pred_fallthru
    _
  // Predicated region
  $region14: #{feed_forward_nn.3} parent=0 // pred_check
    _
  $region15: #{feed_forward_nn.3} parent=0 // pred_check_branch
    %18 = sbr.rel (0) target = $region17
  $region16: #{feed_forward_nn.3} parent=0 // pred_region
    _
  $region17: #{feed_forward_nn.3} parent=0 // pred_fallthru
    _
  // Predicated region
  $region18: #{feed_forward_nn.3} parent=0 // pred_check
    _
  $region19: #{feed_forward_nn.3} parent=0 // pred_check_branch
    %20 = sbr.rel (0) target = $region21
  $region20: #{feed_forward_nn.3} parent=0 // pred_region
    _
  $region21: #{feed_forward_nn.3} parent=0 // pred_fallthru
    _
  %v22 = vld [vmem:[%s1] sm:$0xf]
  %v23 = vld [vmem:[%s1 + $0x4] sm:$0xf]
  %v24 = vld [vmem:[%s1 + $0x8] sm:$0xf]
  %v25 = vld [vmem:[%s1 + $0xc] sm:$0xf]
  %v26 = vld [vmem:[%s0] sm:$0xf]
  %v27 = vld [vmem:[%s0 + $0x4] sm:$0xf]
  %v28 = vld [vmem:[%s0 + $0x8] sm:$0xf]
  %v29 = vld [vmem:[%s3] sm:$0xff]
  %v30 = vld [vmem:[%s3 + $0x8] sm:$0xff]
  %v31 = vld [vmem:[%s3 + $0x10] sm:$0xff]
  %v32 = vld [vmem:[%s3 + $0x18] sm:$0xff]
  %34 = vset.pattern.permute.xlu0 0
  %35 = vperm.xlu0 %34, %v29
  %v36 = vpop.permute.xlu0 %35
  %39 = vset.pattern.permute.xlu0 0
  %40 = vperm.xlu0 %39, %v30
  %v41 = vpop.permute.xlu0 %40
  %44 = vset.pattern.permute.xlu0 0
  %45 = vperm.xlu0 %44, %v31
  %v46 = vpop.permute.xlu0 %45
  %49 = vset.pattern.permute.xlu0 0
  %50 = vperm.xlu0 %49, %v32
  %v51 = vpop.permute.xlu0 %50
  %v57 = vunpack.c.l.b16 %v22
  %v58 = vunpack.c.l.b16 %v23
  %v59 = vunpack.c.l.b16 %v24
  %v60 = vunpack.c.l.b16 %v25
  %v61 = vpack.c.b16 %v58, %v57
  %v62 = vpack.c.b16 %v60, %v59
  %v66 = vunpack.c.l.b16 %v26
  %v67 = vunpack.c.l.b16 %v27
  %v68 = vunpack.c.l.b16 %v28
  %v69 = vpack.c.b16 %v67, %v66
  %v70 = vpack.c.b16 %v68, %v68
  %vm72 = vcmask 195584
  %v74 = vsel %vm72, %v61, 0
  %v77 = vsel %vm72, %v62, 0
  %vm79 = vcmask 1043456
  %v81 = vsel %vm79, %v70, 0
  %83 = vmatprep.subr.bf16.mxu0 0
  %84 = vmatpush1.bf16.msra.mxu0 %v69
  %85 = vmatprep.subr.bf16.mxu0 0
  %86 = vmatpush1.bf16.msra.mxu0 %v81
  %87 = vmatprep.subr.bf16.mxu0 0
  %88 = vmatpush1.bf16.msra.mxu0 0
  %89 = vmatprep.subr.bf16.mxu0 0
  %90 = vmatpush1.bf16.msra.mxu0 0
  %91 = vmatprep.subr.bf16.mxu0 0
  %92 = vmatpush1.bf16.msra.mxu0 0
  %93 = vmatprep.subr.bf16.mxu0 0
  %94 = vmatpush1.bf16.msra.mxu0 0
  %95 = vmatprep.subr.bf16.mxu0 0
  %96 = vmatpush1.bf16.msra.mxu0 0
  %97 = vmatprep.subr.bf16.mxu0 0
  %98 = vmatpush1.bf16.msra.mxu0 0
  %99 = vmatprep.subr.bf16.mxu0 0
  %100 = vmatpush1.bf16.msra.mxu0 0
  %101 = vmatprep.subr.bf16.mxu0 0
  %102 = vmatpush1.bf16.msra.mxu0 0
  %103 = vmatprep.subr.bf16.mxu0 0
  %104 = vmatpush1.bf16.msra.mxu0 0
  %105 = vmatprep.subr.bf16.mxu0 0
  %106 = vmatpush1.bf16.msra.mxu0 0
  %107 = vmatprep.subr.bf16.mxu0 0
  %108 = vmatpush1.bf16.msra.mxu0 0
  %109 = vmatprep.subr.bf16.mxu0 0
  %110 = vmatpush1.bf16.msra.mxu0 0
  %111 = vmatprep.subr.bf16.mxu0 0
  %112 = vmatpush1.bf16.msra.mxu0 0
  %113 = vmatprep.subr.bf16.mxu0 0
  %114 = vmatpush1.bf16.msra.mxu0 0
  %115 = vmatprep.mubr.bf16.mxu0 0
  %116 = vmatmul.mubr.bf16.gmra.mrb[0].mxu0 %v74
  %v117 = vpop.f32.mrb[0].mxu0
  %v118 = vadd.f32 %v36, %v117
  %v119 = vpop.f32.mrb[0].mxu0
  %v120 = vpop.f32.mrb[0].mxu0
  %v121 = vadd.f32 %v41, %v120
  %v122 = vpop.f32.mrb[0].mxu0
  %123 = vmatprep.mubr.bf16.mxu0 0
  %124 = vmatmul.mubr.bf16.gmra.mrb[0].mxu0 %v77
  %v125 = vpop.f32.mrb[0].mxu0
  %v126 = vadd.f32 %v46, %v125
  %v127 = vpop.f32.mrb[0].mxu0
  %v128 = vpop.f32.mrb[0].mxu0
  %v129 = vadd.f32 %v51, %v128
  %v130 = vpop.f32.mrb[0].mxu0
  %131 = vdwg.mxu0
  %v132 = vmax.f32 %v118, 0.0
  %v133 = vmax.f32 %v121, 0.0
  %v134 = vmax.f32 %v126, 0.0
  %v135 = vmax.f32 %v129, 0.0
  %v136 = vlaneseq
  %v137 = vand.u32 %v136, 127
  %s138 = smul.u32 0, 128
  %v139 = vstv %s138
  %v140 = vadd.s32 %v137, %v139
  %vm141 = vcmp.lt.s32.totalorder %v140, 8
  %v142 = vsel %vm141, 1, 0
  %vm143 = vcmp.eq.s32.totalorder %v142, 1
  %v144 = vsel %vm143, %v132, 0.0
  %v145 = vsel %vm143, %v133, 0.0
  %v146 = vsel %vm143, %v134, 0.0
  %v147 = vsel %vm143, %v135, 0.0
  %148 = vadd.xlane.f32.xlu0 %v144
  %v149 = vpop.xlane.xlu0 %148
  %150 = vadd.xlane.f32.xlu0 %v145
  %v151 = vpop.xlane.xlu0 %150
  %152 = vadd.xlane.f32.xlu0 %v146
  %v153 = vpop.xlane.xlu0 %152
  %154 = vadd.xlane.f32.xlu0 %v147
  %v155 = vpop.xlane.xlu0 %154
  %v156 = vmul.f32 %v144, %v144
  %v157 = vmul.f32 %v145, %v145
  %v158 = vmul.f32 %v146, %v146
  %v159 = vmul.f32 %v147, %v147
  %160 = vadd.xlane.f32.xlu0 %v156
  %v161 = vpop.xlane.xlu0 %160
  %162 = vadd.xlane.f32.xlu0 %v157
  %v163 = vpop.xlane.xlu0 %162
  %164 = vadd.xlane.f32.xlu0 %v158
  %v165 = vpop.xlane.xlu0 %164
  %166 = vadd.xlane.f32.xlu0 %v159
  %v167 = vpop.xlane.xlu0 %166
  %vm168 = vcmask 7168
  %v169 = vsel %vm168, %v149, %v161
  %v170 = vsel %vm168, %v151, %v163
  %v171 = vsel %vm168, %v153, %v165
  %v172 = vsel %vm168, %v155, %v167
  %vm173 = vcmask 15360
  %174 = vst.msk [vmem:[%s5] sm:$0xff] %vm173, %v169
  %175 = vst.msk [vmem:[%s5 + $0x8] sm:$0xff] %vm173, %v170
  %176 = vst.msk [vmem:[%s5 + $0x10] sm:$0xff] %vm173, %v171
  %177 = vst.msk [vmem:[%s5 + $0x18] sm:$0xff] %vm173, %v172
  // Predicated region
  $region22: #{feed_forward_nn.3} parent=0 // pred_check
    _
  $region23: #{feed_forward_nn.3} parent=0 // pred_check_branch
    %179 = sbr.rel (0) target = $region25
  $region24: #{feed_forward_nn.3} parent=0 // pred_region
    _
  $region25: #{feed_forward_nn.3} parent=0 // pred_fallthru
    _
  // Predicated region
  $region26: #{feed_forward_nn.3} parent=0 // pred_check
    _
  $region27: #{feed_forward_nn.3} parent=0 // pred_check_branch
    %181 = sbr.rel (0) target = $region29
  $region28: #{feed_forward_nn.3} parent=0 // pred_region
    _
  $region29: #{feed_forward_nn.3} parent=0 // pred_fallthru
    _

// kernel: feed_forward_nn.4
$region0: #{feed_forward_nn.4}
  #allocation0 [shape = 'u32[]', space=smem, size = 0x4, offset = 0x4, fixed_abs, tag = 'smem constant byte address 0x4 - core index']
  #allocation1 [shape = 'u32[144,128]{1,0:T(1,128)}', space=vmem, size = 0x12000, scoped, tag = 'internal scratch']
  #allocation2 [shape = 'f32[1,1]{1,0:T(1,128)S(6)}', space=smem, size = 0x200, scoped, tag = 'scoped memory for feed_forward_nn.4']
  %s0 = inlined_call_operand.vmem [shape: bf16[24,128], index: 0, kind: input, shape index: {}]
  %s1 = inlined_call_operand.vmem [shape: bf16[32,56], index: 1, kind: input, shape index: {}]
  %s2 = inlined_call_operand.vmem [shape: bf16[1,32], index: 2, kind: input, shape index: {}]
  %s3 = inlined_call_operand.vmem [shape: f32[32,8], index: 3, kind: input, shape index: {}]
  %s4 = inlined_call_operand.<no memory space> [shape: f32[1,1], index: 4, kind: input, shape index: {}]
  %s5 = inlined_call_operand.vmem [shape: f32[1,32,2], index: 5, kind: output, shape index: {}]
  %s6 = sld [smem:[#allocation0]]
  $region30: #{feed_forward_nn.4} parent=0
    _
  %s8 = ssub.s32 1, %s6
  %s9 = scalar_select 0, %s8, %s6
  %10 = sst [smem:[#allocation2]] %s4
  // Predicated region
  $region2: #{feed_forward_nn.4} parent=0 // pred_check
    _
  $region3: #{feed_forward_nn.4} parent=0 // pred_check_branch
    %12 = sbr.rel (0) target = $region5
  $region4: #{feed_forward_nn.4} parent=0 // pred_region
    _
  $region5: #{feed_forward_nn.4} parent=0 // pred_fallthru
    _
  // Predicated region
  $region6: #{feed_forward_nn.4} parent=0 // pred_check
    _
  $region7: #{feed_forward_nn.4} parent=0 // pred_check_branch
    %14 = sbr.rel (0) target = $region9
  $region8: #{feed_forward_nn.4} parent=0 // pred_region
    _
  $region9: #{feed_forward_nn.4} parent=0 // pred_fallthru
    _
  // Predicated region
  $region10: #{feed_forward_nn.4} parent=0 // pred_check
    _
  $region11: #{feed_forward_nn.4} parent=0 // pred_check_branch
    %16 = sbr.rel (0) target = $region13
  $region12: #{feed_forward_nn.4} parent=0 // pred_region
    _
  $region13: #{feed_forward_nn.4} parent=0 // pred_fallthru
    _
  // Predicated region
  $region14: #{feed_forward_nn.4} parent=0 // pred_check
    _
  $region15: #{feed_forward_nn.4} parent=0 // pred_check_branch
    %18 = sbr.rel (0) target = $region17
  $region16: #{feed_forward_nn.4} parent=0 // pred_region
    _
  $region17: #{feed_forward_nn.4} parent=0 // pred_fallthru
    _
  // Predicated region
  $region18: #{feed_forward_nn.4} parent=0 // pred_check
    _
  $region19: #{feed_forward_nn.4} parent=0 // pred_check_branch
    %20 = sbr.rel (0) target = $region21
  $region20: #{feed_forward_nn.4} parent=0 // pred_region
    _
  $region21: #{feed_forward_nn.4} parent=0 // pred_fallthru
    _
  %v22 = vld [vmem:[%s1] sm:$0xf]
  %v23 = vld [vmem:[%s1 + $0x4] sm:$0xf]
  %v24 = vld [vmem:[%s1 + $0x8] sm:$0xf]
  %v25 = vld [vmem:[%s1 + $0xc] sm:$0xf]
  %v26 = vld [vmem:[%s0] sm:$0xf]
  %v27 = vld [vmem:[%s0 + $0x4] sm:$0xf]
  %v28 = vld [vmem:[%s0 + $0x8] sm:$0xf]
  %v29 = vld [vmem:[%s3] sm:$0xff]
  %v30 = vld [vmem:[%s3 + $0x8] sm:$0xff]
  %v31 = vld [vmem:[%s3 + $0x10] sm:$0xff]
  %v32 = vld [vmem:[%s3 + $0x18] sm:$0xff]
  %34 = vset.pattern.permute.xlu0 0
  %35 = vperm.xlu0 %34, %v29
  %v36 = vpop.permute.xlu0 %35
  %39 = vset.pattern.permute.xlu0 0
  %40 = vperm.xlu0 %39, %v30
  %v41 = vpop.permute.xlu0 %40
  %44 = vset.pattern.permute.xlu0 0
  %45 = vperm.xlu0 %44, %v31
  %v46 = vpop.permute.xlu0 %45
  %49 = vset.pattern.permute.xlu0 0
  %50 = vperm.xlu0 %49, %v32
  %v51 = vpop.permute.xlu0 %50
  %v57 = vunpack.c.l.b16 %v22
  %v58 = vunpack.c.l.b16 %v23
  %v59 = vunpack.c.l.b16 %v24
  %v60 = vunpack.c.l.b16 %v25
  %v61 = vpack.c.b16 %v58, %v57
  %v62 = vpack.c.b16 %v60, %v59
  %v66 = vunpack.c.l.b16 %v26
  %v67 = vunpack.c.l.b16 %v27
  %v68 = vunpack.c.l.b16 %v28
  %v69 = vpack.c.b16 %v67, %v66
  %v70 = vpack.c.b16 %v68, %v68
  %vm72 = vcmask 195584
  %v74 = vsel %vm72, %v61, 0
  %v77 = vsel %vm72, %v62, 0
  %vm79 = vcmask 1043456
  %v81 = vsel %vm79, %v70, 0
  %83 = vmatprep.subr.bf16.mxu0 0
  %84 = vmatpush1.bf16.msra.mxu0 %v69
  %85 = vmatprep.subr.bf16.mxu0 0
  %86 = vmatpush1.bf16.msra.mxu0 %v81
  %87 = vmatprep.subr.bf16.mxu0 0
  %88 = vmatpush1.bf16.msra.mxu0 0
  %89 = vmatprep.subr.bf16.mxu0 0
  %90 = vmatpush1.bf16.msra.mxu0 0
  %91 = vmatprep.subr.bf16.mxu0 0
  %92 = vmatpush1.bf16.msra.mxu0 0
  %93 = vmatprep.subr.bf16.mxu0 0
  %94 = vmatpush1.bf16.msra.mxu0 0
  %95 = vmatprep.subr.bf16.mxu0 0
  %96 = vmatpush1.bf16.msra.mxu0 0
  %97 = vmatprep.subr.bf16.mxu0 0
  %98 = vmatpush1.bf16.msra.mxu0 0
  %99 = vmatprep.subr.bf16.mxu0 0
  %100 = vmatpush1.bf16.msra.mxu0 0
  %101 = vmatprep.subr.bf16.mxu0 0
  %102 = vmatpush1.bf16.msra.mxu0 0
  %103 = vmatprep.subr.bf16.mxu0 0
  %104 = vmatpush1.bf16.msra.mxu0 0
  %105 = vmatprep.subr.bf16.mxu0 0
  %106 = vmatpush1.bf16.msra.mxu0 0
  %107 = vmatprep.subr.bf16.mxu0 0
  %108 = vmatpush1.bf16.msra.mxu0 0
  %109 = vmatprep.subr.bf16.mxu0 0
  %110 = vmatpush1.bf16.msra.mxu0 0
  %111 = vmatprep.subr.bf16.mxu0 0
  %112 = vmatpush1.bf16.msra.mxu0 0
  %113 = vmatprep.subr.bf16.mxu0 0
  %114 = vmatpush1.bf16.msra.mxu0 0
  %115 = vmatprep.mubr.bf16.mxu0 0
  %116 = vmatmul.mubr.bf16.gmra.mrb[0].mxu0 %v74
  %v117 = vpop.f32.mrb[0].mxu0
  %v118 = vadd.f32 %v36, %v117
  %v119 = vpop.f32.mrb[0].mxu0
  %v120 = vpop.f32.mrb[0].mxu0
  %v121 = vadd.f32 %v41, %v120
  %v122 = vpop.f32.mrb[0].mxu0
  %123 = vmatprep.mubr.bf16.mxu0 0
  %124 = vmatmul.mubr.bf16.gmra.mrb[0].mxu0 %v77
  %v125 = vpop.f32.mrb[0].mxu0
  %v126 = vadd.f32 %v46, %v125
  %v127 = vpop.f32.mrb[0].mxu0
  %v128 = vpop.f32.mrb[0].mxu0
  %v129 = vadd.f32 %v51, %v128
  %v130 = vpop.f32.mrb[0].mxu0
  %131 = vdwg.mxu0
  %v132 = vmax.f32 %v118, 0.0
  %v133 = vmax.f32 %v121, 0.0
  %v134 = vmax.f32 %v126, 0.0
  %v135 = vmax.f32 %v129, 0.0
  %136 = vset.pattern.permute.xlu0 2
  %137 = vperm.xlu0 %136, %v29
  %v138 = vpop.permute.xlu0 %137
  %140 = vset.pattern.permute.xlu0 2
  %141 = vperm.xlu0 %140, %v30
  %v142 = vpop.permute.xlu0 %141
  %144 = vset.pattern.permute.xlu0 2
  %145 = vperm.xlu0 %144, %v31
  %v146 = vpop.permute.xlu0 %145
  %148 = vset.pattern.permute.xlu0 2
  %149 = vperm.xlu0 %148, %v32
  %v150 = vpop.permute.xlu0 %149
  %v152 = vmul.f32 %v132, %v138
  %v153 = vmul.f32 %v133, %v142
  %v154 = vmul.f32 %v134, %v146
  %v155 = vmul.f32 %v135, %v150
  %156 = vset.pattern.permute.xlu0 3
  %157 = vperm.xlu0 %156, %v29
  %v158 = vpop.permute.xlu0 %157
  %160 = vset.pattern.permute.xlu0 3
  %161 = vperm.xlu0 %160, %v30
  %v162 = vpop.permute.xlu0 %161
  %164 = vset.pattern.permute.xlu0 3
  %165 = vperm.xlu0 %164, %v31
  %v166 = vpop.permute.xlu0 %165
  %168 = vset.pattern.permute.xlu0 3
  %169 = vperm.xlu0 %168, %v32
  %v170 = vpop.permute.xlu0 %169
  %v172 = vadd.f32 %v152, %v158
  %v173 = vadd.f32 %v153, %v162
  %v174 = vadd.f32 %v154, %v166
  %v175 = vadd.f32 %v155, %v170
  %v176 = vpack.c.bf16 %v173, %v172
  %v177 = vpack.c.bf16 %v175, %v174
  %178 = vset.pattern.permute.xlu0 1
  %179 = vperm.xlu0 %178, %v29
  %v180 = vpop.permute.xlu0 %179
  %182 = vset.pattern.permute.xlu0 1
  %183 = vperm.xlu0 %182, %v30
  %v184 = vpop.permute.xlu0 %183
  %186 = vset.pattern.permute.xlu0 1
  %187 = vperm.xlu0 %186, %v31
  %v188 = vpop.permute.xlu0 %187
  %190 = vset.pattern.permute.xlu0 1
  %191 = vperm.xlu0 %190, %v32
  %v192 = vpop.permute.xlu0 %191
  %194 = vrot.lane.b32.xlu0 %v61, 104
  %v195 = vpop.permute.xlu0 %194
  %196 = vrot.lane.b32.xlu0 %v62, 104
  %v197 = vpop.permute.xlu0 %196
  %vm198 = vcmask 261120
  %v200 = vsel %vm198, %v195, 0
  %v203 = vsel %vm198, %v197, 0
  %205 = vmatprep.subr.bf16.mxu0 0
  %206 = vmatpush1.bf16.msra.mxu0 %v176
  %207 = vmatprep.subr.bf16.mxu0 0
  %208 = vmatpush1.bf16.msra.mxu0 %v177
  %209 = vmatprep.subr.bf16.mxu0 0
  %210 = vmatpush1.bf16.msra.mxu0 0
  %211 = vmatprep.subr.bf16.mxu0 0
  %212 = vmatpush1.bf16.msra.mxu0 0
  %213 = vmatprep.subr.bf16.mxu0 0
  %214 = vmatpush1.bf16.msra.mxu0 0
  %215 = vmatprep.subr.bf16.mxu0 0
  %216 = vmatpush1.bf16.msra.mxu0 0
  %217 = vmatprep.subr.bf16.mxu0 0
  %218 = vmatpush1.bf16.msra.mxu0 0
  %219 = vmatprep.subr.bf16.mxu0 0
  %220 = vmatpush1.bf16.msra.mxu0 0
  %221 = vmatprep.subr.bf16.mxu0 0
  %222 = vmatpush1.bf16.msra.mxu0 0
  %223 = vmatprep.subr.bf16.mxu0 0
  %224 = vmatpush1.bf16.msra.mxu0 0
  %225 = vmatprep.subr.bf16.mxu0 0
  %226 = vmatpush1.bf16.msra.mxu0 0
  %227 = vmatprep.subr.bf16.mxu0 0
  %228 = vmatpush1.bf16.msra.mxu0 0
  %229 = vmatprep.subr.bf16.mxu0 0
  %230 = vmatpush1.bf16.msra.mxu0 0
  %231 = vmatprep.subr.bf16.mxu0 0
  %232 = vmatpush1.bf16.msra.mxu0 0
  %233 = vmatprep.subr.bf16.mxu0 0
  %234 = vmatpush1.bf16.msra.mxu0 0
  %235 = vmatprep.subr.bf16.mxu0 0
  %236 = vmatpush1.bf16.msra.mxu0 0
  %237 = vmatprep.mubr.bf16.mxu0 0
  %238 = vmatmul.mubr.bf16.gmra.mrb[0].mxu0 %v200
  %v239 = vpop.f32.mrb[0].mxu0
  %v240 = vadd.f32 %v180, %v239
  %v241 = vpop.f32.mrb[0].mxu0
  %v242 = vpop.f32.mrb[0].mxu0
  %v243 = vadd.f32 %v184, %v242
  %v244 = vpop.f32.mrb[0].mxu0
  %245 = vmatprep.mubr.bf16.mxu0 0
  %246 = vmatmul.mubr.bf16.gmra.mrb[0].mxu0 %v203
  %v247 = vpop.f32.mrb[0].mxu0
  %v248 = vadd.f32 %v188, %v247
  %v249 = vpop.f32.mrb[0].mxu0
  %v250 = vpop.f32.mrb[0].mxu0
  %v251 = vadd.f32 %v192, %v250
  %v252 = vpop.f32.mrb[0].mxu0
  %253 = vdwg.mxu0
  %v254 = vmax.f32 %v240, 0.0
  %v255 = vmax.f32 %v243, 0.0
  %v256 = vmax.f32 %v248, 0.0
  %v257 = vmax.f32 %v251, 0.0
  %v258 = vlaneseq
  %v259 = vand.u32 %v258, 127
  %s260 = smul.u32 0, 128
  %v261 = vstv %s260
  %v262 = vadd.s32 %v259, %v261
  %vm263 = vcmp.lt.s32.totalorder %v262, 8
  %v264 = vsel %vm263, 1, 0
  %vm265 = vcmp.eq.s32.totalorder %v264, 1
  %v266 = vsel %vm265, %v254, 0.0
  %v267 = vsel %vm265, %v255, 0.0
  %v268 = vsel %vm265, %v256, 0.0
  %v269 = vsel %vm265, %v257, 0.0
  %270 = vadd.xlane.f32.xlu0 %v266
  %v271 = vpop.xlane.xlu0 %270
  %272 = vadd.xlane.f32.xlu0 %v267
  %v273 = vpop.xlane.xlu0 %272
  %274 = vadd.xlane.f32.xlu0 %v268
  %v275 = vpop.xlane.xlu0 %274
  %276 = vadd.xlane.f32.xlu0 %v269
  %v277 = vpop.xlane.xlu0 %276
  %v278 = vmul.f32 %v266, %v266
  %v279 = vmul.f32 %v267, %v267
  %v280 = vmul.f32 %v268, %v268
  %v281 = vmul.f32 %v269, %v269
  %282 = vadd.xlane.f32.xlu0 %v278
  %v283 = vpop.xlane.xlu0 %282
  %284 = vadd.xlane.f32.xlu0 %v279
  %v285 = vpop.xlane.xlu0 %284
  %286 = vadd.xlane.f32.xlu0 %v280
  %v287 = vpop.xlane.xlu0 %286
  %288 = vadd.xlane.f32.xlu0 %v281
  %v289 = vpop.xlane.xlu0 %288
  %vm290 = vcmask 7168
  %v291 = vsel %vm290, %v271, %v283
  %v292 = vsel %vm290, %v273, %v285
  %v293 = vsel %vm290, %v275, %v287
  %v294 = vsel %vm290, %v277, %v289
  %vm295 = vcmask 15360
  %296 = vst.msk [vmem:[%s5] sm:$0xff] %vm295, %v291
  %297 = vst.msk [vmem:[%s5 + $0x8] sm:$0xff] %vm295, %v292
  %298 = vst.msk [vmem:[%s5 + $0x10] sm:$0xff] %vm295, %v293
  %299 = vst.msk [vmem:[%s5 + $0x18] sm:$0xff] %vm295, %v294
  // Predicated region
  $region22: #{feed_forward_nn.4} parent=0 // pred_check
    _
  $region23: #{feed_forward_nn.4} parent=0 // pred_check_branch
    %301 = sbr.rel (0) target = $region25
  $region24: #{feed_forward_nn.4} parent=0 // pred_region
    _
  $region25: #{feed_forward_nn.4} parent=0 // pred_fallthru
    _
  // Predicated region
  $region26: #{feed_forward_nn.4} parent=0 // pred_check
    _
  $region27: #{feed_forward_nn.4} parent=0 // pred_check_branch
    %303 = sbr.rel (0) target = $region29
  $region28: #{feed_forward_nn.4} parent=0 // pred_region
    _
  $region29: #{feed_forward_nn.4} parent=0 // pred_fallthru
    _

// kernel: feed_forward_nn.5
$region0: #{feed_forward_nn.5}
  #allocation0 [shape = 'u32[]', space=smem, size = 0x4, offset = 0x4, fixed_abs, tag = 'smem constant byte address 0x4 - core index']
  #allocation1 [shape = 'u32[144,128]{1,0:T(1,128)}', space=vmem, size = 0x12000, scoped, tag = 'internal scratch']
  #allocation2 [shape = 'f32[1,1]{1,0:T(1,128)S(6)}', space=smem, size = 0x200, scoped, tag = 'scoped memory for feed_forward_nn.5']
  %s0 = inlined_call_operand.vmem [shape: bf16[24,128], index: 0, kind: input, shape index: {}]
  %s1 = inlined_call_operand.vmem [shape: bf16[32,56], index: 1, kind: input, shape index: {}]
  %s2 = inlined_call_operand.vmem [shape: bf16[1,32], index: 2, kind: input, shape index: {}]
  %s3 = inlined_call_operand.vmem [shape: f32[32,8], index: 3, kind: input, shape index: {}]
  %s4 = inlined_call_operand.<no memory space> [shape: f32[1,1], index: 4, kind: input, shape index: {}]
  %s5 = inlined_call_operand.vmem [shape: f32[1,1,128], index: 5, kind: output, shape index: {}]
  %s6 = sld [smem:[#allocation0]]
  $region30: #{feed_forward_nn.5} parent=0
    _
  %s8 = ssub.s32 1, %s6
  %s9 = scalar_select 0, %s8, %s6
  %10 = sst [smem:[#allocation2]] %s4
  // Predicated region
  $region2: #{feed_forward_nn.5} parent=0 // pred_check
    _
  $region3: #{feed_forward_nn.5} parent=0 // pred_check_branch
    %12 = sbr.rel (0) target = $region5
  $region4: #{feed_forward_nn.5} parent=0 // pred_region
    _
  $region5: #{feed_forward_nn.5} parent=0 // pred_fallthru
    _
  // Predicated region
  $region6: #{feed_forward_nn.5} parent=0 // pred_check
    _
  $region7: #{feed_forward_nn.5} parent=0 // pred_check_branch
    %14 = sbr.rel (0) target = $region9
  $region8: #{feed_forward_nn.5} parent=0 // pred_region
    _
  $region9: #{feed_forward_nn.5} parent=0 // pred_fallthru
    _
  // Predicated region
  $region10: #{feed_forward_nn.5} parent=0 // pred_check
    _
  $region11: #{feed_forward_nn.5} parent=0 // pred_check_branch
    %16 = sbr.rel (0) target = $region13
  $region12: #{feed_forward_nn.5} parent=0 // pred_region
    _
  $region13: #{feed_forward_nn.5} parent=0 // pred_fallthru
    _
  // Predicated region
  $region14: #{feed_forward_nn.5} parent=0 // pred_check
    _
  $region15: #{feed_forward_nn.5} parent=0 // pred_check_branch
    %18 = sbr.rel (0) target = $region17
  $region16: #{feed_forward_nn.5} parent=0 // pred_region
    _
  $region17: #{feed_forward_nn.5} parent=0 // pred_fallthru
    _
  // Predicated region
  $region18: #{feed_forward_nn.5} parent=0 // pred_check
    _
  $region19: #{feed_forward_nn.5} parent=0 // pred_check_branch
    %20 = sbr.rel (0) target = $region21
  $region20: #{feed_forward_nn.5} parent=0 // pred_region
    _
  $region21: #{feed_forward_nn.5} parent=0 // pred_fallthru
    _
  %v22 = vld [vmem:[%s1] sm:$0xf]
  %v23 = vld [vmem:[%s1 + $0x4] sm:$0xf]
  %v24 = vld [vmem:[%s1 + $0x8] sm:$0xf]
  %v25 = vld [vmem:[%s1 + $0xc] sm:$0xf]
  %v26 = vld [vmem:[%s0] sm:$0xf]
  %v27 = vld [vmem:[%s0 + $0x4] sm:$0xf]
  %v28 = vld [vmem:[%s0 + $0x8] sm:$0xf]
  %v29 = vld [vmem:[%s3] sm:$0xff]
  %v30 = vld [vmem:[%s3 + $0x8] sm:$0xff]
  %v31 = vld [vmem:[%s3 + $0x10] sm:$0xff]
  %v32 = vld [vmem:[%s3 + $0x18] sm:$0xff]
  %34 = vset.pattern.permute.xlu0 0
  %35 = vperm.xlu0 %34, %v29
  %v36 = vpop.permute.xlu0 %35
  %39 = vset.pattern.permute.xlu0 0
  %40 = vperm.xlu0 %39, %v30
  %v41 = vpop.permute.xlu0 %40
  %44 = vset.pattern.permute.xlu0 0
  %45 = vperm.xlu0 %44, %v31
  %v46 = vpop.permute.xlu0 %45
  %49 = vset.pattern.permute.xlu0 0
  %50 = vperm.xlu0 %49, %v32
  %v51 = vpop.permute.xlu0 %50
  %v57 = vunpack.c.l.b16 %v22
  %v58 = vunpack.c.l.b16 %v23
  %v59 = vunpack.c.l.b16 %v24
  %v60 = vunpack.c.l.b16 %v25
  %v61 = vpack.c.b16 %v58, %v57
  %v62 = vpack.c.b16 %v60, %v59
  %v66 = vunpack.c.l.b16 %v26
  %v67 = vunpack.c.l.b16 %v27
  %v68 = vunpack.c.l.b16 %v28
  %v69 = vpack.c.b16 %v67, %v66
  %v70 = vpack.c.b16 %v68, %v68
  %vm72 = vcmask 195584
  %v74 = vsel %vm72, %v61, 0
  %v77 = vsel %vm72, %v62, 0
  %vm79 = vcmask 1043456
  %v81 = vsel %vm79, %v70, 0
  %83 = vmatprep.subr.bf16.mxu0 0
  %84 = vmatpush1.bf16.msra.mxu0 %v69
  %85 = vmatprep.subr.bf16.mxu0 0
  %86 = vmatpush1.bf16.msra.mxu0 %v81
  %87 = vmatprep.subr.bf16.mxu0 0
  %88 = vmatpush1.bf16.msra.mxu0 0
  %89 = vmatprep.subr.bf16.mxu0 0
  %90 = vmatpush1.bf16.msra.mxu0 0
  %91 = vmatprep.subr.bf16.mxu0 0
  %92 = vmatpush1.bf16.msra.mxu0 0
  %93 = vmatprep.subr.bf16.mxu0 0
  %94 = vmatpush1.bf16.msra.mxu0 0
  %95 = vmatprep.subr.bf16.mxu0 0
  %96 = vmatpush1.bf16.msra.mxu0 0
  %97 = vmatprep.subr.bf16.mxu0 0
  %98 = vmatpush1.bf16.msra.mxu0 0
  %99 = vmatprep.subr.bf16.mxu0 0
  %100 = vmatpush1.bf16.msra.mxu0 0
  %101 = vmatprep.subr.bf16.mxu0 0
  %102 = vmatpush1.bf16.msra.mxu0 0
  %103 = vmatprep.subr.bf16.mxu0 0
  %104 = vmatpush1.bf16.msra.mxu0 0
  %105 = vmatprep.subr.bf16.mxu0 0
  %106 = vmatpush1.bf16.msra.mxu0 0
  %107 = vmatprep.subr.bf16.mxu0 0
  %108 = vmatpush1.bf16.msra.mxu0 0
  %109 = vmatprep.subr.bf16.mxu0 0
  %110 = vmatpush1.bf16.msra.mxu0 0
  %111 = vmatprep.subr.bf16.mxu0 0
  %112 = vmatpush1.bf16.msra.mxu0 0
  %113 = vmatprep.subr.bf16.mxu0 0
  %114 = vmatpush1.bf16.msra.mxu0 0
  %115 = vmatprep.mubr.bf16.mxu0 0
  %116 = vmatmul.mubr.bf16.gmra.mrb[0].mxu0 %v74
  %v117 = vpop.f32.mrb[0].mxu0
  %v118 = vadd.f32 %v36, %v117
  %v119 = vpop.f32.mrb[0].mxu0
  %v120 = vpop.f32.mrb[0].mxu0
  %v121 = vadd.f32 %v41, %v120
  %v122 = vpop.f32.mrb[0].mxu0
  %123 = vmatprep.mubr.bf16.mxu0 0
  %124 = vmatmul.mubr.bf16.gmra.mrb[0].mxu0 %v77
  %v125 = vpop.f32.mrb[0].mxu0
  %v126 = vadd.f32 %v46, %v125
  %v127 = vpop.f32.mrb[0].mxu0
  %v128 = vpop.f32.mrb[0].mxu0
  %v129 = vadd.f32 %v51, %v128
  %v130 = vpop.f32.mrb[0].mxu0
  %131 = vdwg.mxu0
  %v132 = vmax.f32 %v118, 0.0
  %v133 = vmax.f32 %v121, 0.0
  %v134 = vmax.f32 %v126, 0.0
  %v135 = vmax.f32 %v129, 0.0
  %136 = vset.pattern.permute.xlu0 2
  %137 = vperm.xlu0 %136, %v29
  %v138 = vpop.permute.xlu0 %137
  %140 = vset.pattern.permute.xlu0 2
  %141 = vperm.xlu0 %140, %v30
  %v142 = vpop.permute.xlu0 %141
  %144 = vset.pattern.permute.xlu0 2
  %145 = vperm.xlu0 %144, %v31
  %v146 = vpop.permute.xlu0 %145
  %148 = vset.pattern.permute.xlu0 2
  %149 = vperm.xlu0 %148, %v32
  %v150 = vpop.permute.xlu0 %149
  %v152 = vmul.f32 %v132, %v138
  %v153 = vmul.f32 %v133, %v142
  %v154 = vmul.f32 %v134, %v146
  %v155 = vmul.f32 %v135, %v150
  %156 = vset.pattern.permute.xlu0 3
  %157 = vperm.xlu0 %156, %v29
  %v158 = vpop.permute.xlu0 %157
  %160 = vset.pattern.permute.xlu0 3
  %161 = vperm.xlu0 %160, %v30
  %v162 = vpop.permute.xlu0 %161
  %164 = vset.pattern.permute.xlu0 3
  %165 = vperm.xlu0 %164, %v31
  %v166 = vpop.permute.xlu0 %165
  %168 = vset.pattern.permute.xlu0 3
  %169 = vperm.xlu0 %168, %v32
  %v170 = vpop.permute.xlu0 %169
  %v172 = vadd.f32 %v152, %v158
  %v173 = vadd.f32 %v153, %v162
  %v174 = vadd.f32 %v154, %v166
  %v175 = vadd.f32 %v155, %v170
  %v176 = vpack.c.bf16 %v173, %v172
  %v177 = vpack.c.bf16 %v175, %v174
  %178 = vset.pattern.permute.xlu0 1
  %179 = vperm.xlu0 %178, %v29
  %v180 = vpop.permute.xlu0 %179
  %182 = vset.pattern.permute.xlu0 1
  %183 = vperm.xlu0 %182, %v30
  %v184 = vpop.permute.xlu0 %183
  %186 = vset.pattern.permute.xlu0 1
  %187 = vperm.xlu0 %186, %v31
  %v188 = vpop.permute.xlu0 %187
  %190 = vset.pattern.permute.xlu0 1
  %191 = vperm.xlu0 %190, %v32
  %v192 = vpop.permute.xlu0 %191
  %194 = vrot.lane.b32.xlu0 %v61, 104
  %v195 = vpop.permute.xlu0 %194
  %196 = vrot.lane.b32.xlu0 %v62, 104
  %v197 = vpop.permute.xlu0 %196
  %vm198 = vcmask 261120
  %v200 = vsel %vm198, %v195, 0
  %v203 = vsel %vm198, %v197, 0
  %205 = vmatprep.subr.bf16.mxu0 0
  %206 = vmatpush1.bf16.msra.mxu0 %v176
  %207 = vmatprep.subr.bf16.mxu0 0
  %208 = vmatpush1.bf16.msra.mxu0 %v177
  %209 = vmatprep.subr.bf16.mxu0 0
  %210 = vmatpush1.bf16.msra.mxu0 0
  %211 = vmatprep.subr.bf16.mxu0 0
  %212 = vmatpush1.bf16.msra.mxu0 0
  %213 = vmatprep.subr.bf16.mxu0 0
  %214 = vmatpush1.bf16.msra.mxu0 0
  %215 = vmatprep.subr.bf16.mxu0 0
  %216 = vmatpush1.bf16.msra.mxu0 0
  %217 = vmatprep.subr.bf16.mxu0 0
  %218 = vmatpush1.bf16.msra.mxu0 0
  %219 = vmatprep.subr.bf16.mxu0 0
  %220 = vmatpush1.bf16.msra.mxu0 0
  %221 = vmatprep.subr.bf16.mxu0 0
  %222 = vmatpush1.bf16.msra.mxu0 0
  %223 = vmatprep.subr.bf16.mxu0 0
  %224 = vmatpush1.bf16.msra.mxu0 0
  %225 = vmatprep.subr.bf16.mxu0 0
  %226 = vmatpush1.bf16.msra.mxu0 0
  %227 = vmatprep.subr.bf16.mxu0 0
  %228 = vmatpush1.bf16.msra.mxu0 0
  %229 = vmatprep.subr.bf16.mxu0 0
  %230 = vmatpush1.bf16.msra.mxu0 0
  %231 = vmatprep.subr.bf16.mxu0 0
  %232 = vmatpush1.bf16.msra.mxu0 0
  %233 = vmatprep.subr.bf16.mxu0 0
  %234 = vmatpush1.bf16.msra.mxu0 0
  %235 = vmatprep.subr.bf16.mxu0 0
  %236 = vmatpush1.bf16.msra.mxu0 0
  %237 = vmatprep.mubr.bf16.mxu0 0
  %238 = vmatmul.mubr.bf16.gmra.mrb[0].mxu0 %v200
  %v239 = vpop.f32.mrb[0].mxu0
  %v240 = vadd.f32 %v180, %v239
  %v241 = vpop.f32.mrb[0].mxu0
  %v242 = vpop.f32.mrb[0].mxu0
  %v243 = vadd.f32 %v184, %v242
  %v244 = vpop.f32.mrb[0].mxu0
  %245 = vmatprep.mubr.bf16.mxu0 0
  %246 = vmatmul.mubr.bf16.gmra.mrb[0].mxu0 %v203
  %v247 = vpop.f32.mrb[0].mxu0
  %v248 = vadd.f32 %v188, %v247
  %v249 = vpop.f32.mrb[0].mxu0
  %v250 = vpop.f32.mrb[0].mxu0
  %v251 = vadd.f32 %v192, %v250
  %v252 = vpop.f32.mrb[0].mxu0
  %253 = vdwg.mxu0
  %v254 = vmax.f32 %v240, 0.0
  %v255 = vmax.f32 %v243, 0.0
  %v256 = vmax.f32 %v248, 0.0
  %v257 = vmax.f32 %v251, 0.0
  %258 = vset.pattern.permute.xlu0 4
  %259 = vperm.xlu0 %258, %v29
  %v260 = vpop.permute.xlu0 %259
  %262 = vset.pattern.permute.xlu0 4
  %263 = vperm.xlu0 %262, %v30
  %v264 = vpop.permute.xlu0 %263
  %266 = vset.pattern.permute.xlu0 4
  %267 = vperm.xlu0 %266, %v31
  %v268 = vpop.permute.xlu0 %267
  %270 = vset.pattern.permute.xlu0 4
  %271 = vperm.xlu0 %270, %v32
  %v272 = vpop.permute.xlu0 %271
  %v274 = vmul.f32 %v254, %v260
  %v275 = vmul.f32 %v255, %v264
  %v276 = vmul.f32 %v256, %v268
  %v277 = vmul.f32 %v257, %v272
  %278 = vset.pattern.permute.xlu0 5
  %279 = vperm.xlu0 %278, %v29
  %v280 = vpop.permute.xlu0 %279
  %282 = vset.pattern.permute.xlu0 5
  %283 = vperm.xlu0 %282, %v30
  %v284 = vpop.permute.xlu0 %283
  %286 = vset.pattern.permute.xlu0 5
  %287 = vperm.xlu0 %286, %v31
  %v288 = vpop.permute.xlu0 %287
  %290 = vset.pattern.permute.xlu0 5
  %291 = vperm.xlu0 %290, %v32
  %v292 = vpop.permute.xlu0 %291
  %v294 = vadd.f32 %v274, %v280
  %v295 = vadd.f32 %v275, %v284
  %v296 = vadd.f32 %v276, %v288
  %v297 = vadd.f32 %v277, %v292
  %v298 = vld [vmem:[%s2] sm:$0x1]
  %v299 = vpack.c.bf16 %v295, %v294
  %v300 = vpack.c.bf16 %v297, %v296
  %s301 = sld [smem:[#allocation2]]
  %v302 = vstv %s301
  %v304 = vsel %vm198, %v298, 0
  %306 = vmatprep.subr.bf16.mxu0 0
  %307 = vmatpush1.bf16.msra.mxu0 %v299
  %308 = vmatprep.subr.bf16.mxu0 0
  %309 = vmatpush1.bf16.msra.mxu0 %v300
  %310 = vmatprep.subr.bf16.mxu0 0
  %311 = vmatpush1.bf16.msra.mxu0 0
  %312 = vmatprep.subr.bf16.mxu0 0
  %313 = vmatpush1.bf16.msra.mxu0 0
  %314 = vmatprep.subr.bf16.mxu0 0
  %315 = vmatpush1.bf16.msra.mxu0 0
  %316 = vmatprep.subr.bf16.mxu0 0
  %317 = vmatpush1.bf16.msra.mxu0 0
  %318 = vmatprep.subr.bf16.mxu0 0
  %319 = vmatpush1.bf16.msra.mxu0 0
  %320 = vmatprep.subr.bf16.mxu0 0
  %321 = vmatpush1.bf16.msra.mxu0 0
  %322 = vmatprep.subr.bf16.mxu0 0
  %323 = vmatpush1.bf16.msra.mxu0 0
  %324 = vmatprep.subr.bf16.mxu0 0
  %325 = vmatpush1.bf16.msra.mxu0 0
  %326 = vmatprep.subr.bf16.mxu0 0
  %327 = vmatpush1.bf16.msra.mxu0 0
  %328 = vmatprep.subr.bf16.mxu0 0
  %329 = vmatpush1.bf16.msra.mxu0 0
  %330 = vmatprep.subr.bf16.mxu0 0
  %331 = vmatpush1.bf16.msra.mxu0 0
  %332 = vmatprep.subr.bf16.mxu0 0
  %333 = vmatpush1.bf16.msra.mxu0 0
  %334 = vmatprep.subr.bf16.mxu0 0
  %335 = vmatpush1.bf16.msra.mxu0 0
  %336 = vmatprep.subr.bf16.mxu0 0
  %337 = vmatpush1.bf16.msra.mxu0 0
  %338 = vmatprep.mubr.bf16.mxu0 0
  %339 = vmatmul.mubr.bf16.gmra.mrb[0].mxu0 %v304
  %v340 = vpop.f32.mrb[0].mxu0
  %v341 = vadd.f32 %v302, %v340
  %v342 = vpop.f32.mrb[0].mxu0
  %v343 = vpop.f32.mrb[0].mxu0
  %v344 = vpop.f32.mrb[0].mxu0
  %345 = vdwg.mxu0
  %346 = vst [vmem:[%s5] sm:$0x1] %v341
  // Predicated region
  $region22: #{feed_forward_nn.5} parent=0 // pred_check
    _
  $region23: #{feed_forward_nn.5} parent=0 // pred_check_branch
    %348 = sbr.rel (0) target = $region25
  $region24: #{feed_forward_nn.5} parent=0 // pred_region
    _
  $region25: #{feed_forward_nn.5} parent=0 // pred_fallthru
    _
  // Predicated region
  $region26: #{feed_forward_nn.5} parent=0 // pred_check
    _
  $region27: #{feed_forward_nn.5} parent=0 // pred_check_branch
    %350 = sbr.rel (0) target = $region29
  $region28: #{feed_forward_nn.5} parent=0 // pred_region
    _
  $region29: #{feed_forward_nn.5} parent=0 // pred_fallthru
    _

</llo_original>
